<compile_context>
chip_gen: v7x
topology: tpu7x:2x2x1
jax: 0.10.0
libtpu: 0.0.40
codegen_flags: <defaults>
</compile_context>

<pallas_src>
import functools

import jax
import jax.numpy as jnp
from jax.experimental import pallas as pl
from jax.experimental.pallas import tpu as pltpu

# torch.nn.RMSNorm(dim) default eps=None resolves to finfo(float32).eps for the
# f32 compute path used here.
_EPS_F32 = float(jnp.finfo(jnp.float32).eps)

# VMEM sizing: keep the double-buffered tile footprint conservative so the same
# tile choice is safe on v7x (64 MiB physical VMEM/TC) as well as v5e/v6e
# (128 MiB).  Scoped limit gets a little headroom on top of the budget.
_TILE_VMEM_BUDGET = 32 * 1024 * 1024   # bytes used for picking row_tile
_VMEM_LIMIT_BYTES = 48 * 1024 * 1024   # scoped VMEM limit handed to Mosaic


def _residual_tanh_gated_rmsnorm_kernel(x_ref, xres_ref, gate_ref, w_ref, o_ref,
                                        *, inv_d, eps):
    # All math in f32 (inputs may be bf16 at the HBM boundary).
    xr = xres_ref[...].astype(jnp.float32)
    # RMSNorm over last dim: x / sqrt(mean(x^2) + eps) * weight
    # mean == sum * (1/D) with 1/D hoisted as a Python constant.
    ms = jnp.sum(xr * xr, axis=-1, keepdims=True) * inv_d
    normed = xr * jax.lax.rsqrt(ms + eps)
    normed = normed * w_ref[...].astype(jnp.float32)          # (1, D) broadcast
    tanh_gate = jnp.tanh(1.0 - gate_ref[...].astype(jnp.float32))
    out = x_ref[...].astype(jnp.float32) + normed * tanh_gate
    o_ref[...] = out.astype(o_ref.dtype)


def _pick_row_tile(n_rows, d, io_itemsize):
    """Largest row tile (multiple of 8) whose pipelined footprint fits budget."""
    # 4 row streams (x, x_res, gate, out) double-buffered at HBM dtype,
    # plus ~3 f32-wide elementwise temporaries for the compute.
    bytes_per_row = d * (4 * 2 * io_itemsize + 3 * 4)
    t = _TILE_VMEM_BUDGET // max(1, bytes_per_row)
    t = (t // 8) * 8
    t = max(8, min(1024, t))
    # No point tiling past the (8-rounded) number of rows.
    t = min(t, max(8, ((n_rows + 7) // 8) * 8))
    return int(t)


def residual_tanh_gated_rmsnorm(x, x_res, gate, weight, *, row_tile=None, eps=None):
    """x, x_res, gate: (B, T, D); weight: (D,). Returns (B, T, D)."""
    B, T, D = x.shape
    N = B * T

    if eps is None:
        eps = _EPS_F32
    io_itemsize = jnp.dtype(x.dtype).itemsize
    if row_tile is None:
        row_tile = _pick_row_tile(N, D, io_itemsize)
    else:
        row_tile = max(8, (int(row_tile) // 8) * 8)

    x2 = x.reshape(N, D)
    xr2 = x_res.reshape(N, D)
    g2 = gate.reshape(N, D)
    w2 = weight.reshape(1, D)

    grid = (pl.cdiv(N, row_tile),)          # partial tail tile handled by Pallas
    row_spec = pl.BlockSpec((row_tile, D), lambda i: (i, 0))
    w_spec = pl.BlockSpec((1, D), lambda i: (0, 0))

    kernel = functools.partial(
        _residual_tanh_gated_rmsnorm_kernel, inv_d=1.0 / float(D), eps=float(eps))

    out = pl.pallas_call(
        kernel,
        out_shape=jax.ShapeDtypeStruct((N, D), x.dtype),
        grid_spec=pltpu.PrefetchScalarGridSpec(
            num_scalar_prefetch=0,
            grid=grid,
            in_specs=[row_spec, row_spec, row_spec, w_spec],
            out_specs=row_spec,
        ),
        compiler_params=pltpu.CompilerParams(
            dimension_semantics=("parallel",),    # megacore-shard row loop (v7x)
            vmem_limit_bytes=_VMEM_LIMIT_BYTES,
        ),
    )(x2, xr2, g2, w2)

    return out.reshape(B, T, D)


def _reference(x, x_res, gate, weight, eps=_EPS_F32):
    xr = x_res.astype(jnp.float32)
    ms = jnp.mean(xr * xr, axis=-1, keepdims=True)
    normed = xr * jax.lax.rsqrt(ms + eps) * weight.astype(jnp.float32)
    out = x.astype(jnp.float32) + normed * jnp.tanh(1.0 - gate.astype(jnp.float32))
    return out.astype(x.dtype)


if __name__ == "__main__":
    # Small deterministic test shapes (B, T, D). Production D is typically a
    # multiple of 128 (lane-dense output); D=32 here is just the smoke test.
    B, T, D = 2, 8, 32
    key = jax.random.PRNGKey(0)
    k1, k2, k3 = jax.random.split(key, 3)
    x = jax.random.normal(k1, (B, T, D), dtype=jnp.float32)
    x_res = jax.random.normal(k2, (B, T, D), dtype=jnp.float32)
    gate = jax.random.normal(k3, (B, T, D), dtype=jnp.float32)
    # nn.RMSNorm weight initialized to ones (matches torch init).
    weight = jnp.ones((D,), dtype=jnp.float32)

    out = residual_tanh_gated_rmsnorm(x, x_res, gate, weight)
    out = jax.block_until_ready(out)

    ref = _reference(x, x_res, gate, weight)
    assert jnp.allclose(out, ref, atol=1e-5, rtol=1e-5), "mismatch vs reference"
    print("KERNEL_OK")
</pallas_src>

<mosaic_0001>
module attributes {stable_mosaic.version = 11 : i64} {
  func.func @_residual_tanh_gated_rmsnorm_kernel(%arg0: i32, %arg1: memref<16x32xf32, #tpu.memory_space<vmem>>, %arg2: memref<16x32xf32, #tpu.memory_space<vmem>>, %arg3: memref<16x32xf32, #tpu.memory_space<vmem>>, %arg4: memref<1x32xf32, #tpu.memory_space<vmem>>, %arg5: memref<16x32xf32, #tpu.memory_space<vmem>>) attributes {dimension_semantics = [#tpu.dimension_semantics<parallel>], iteration_bounds = array<i64: 1>, scalar_prefetch = 0 : i64, scratch_operands = 0 : i64, tpu.core_type = #tpu.core_type<tc>, window_params = [{transform_indices = @transform_0, window_bounds = array<i64: 16, 32>}, {transform_indices = @transform_1, window_bounds = array<i64: 16, 32>}, {transform_indices = @transform_2, window_bounds = array<i64: 16, 32>}, {pipeline_mode = #tpu.pipeline_mode<synchronous>, transform_indices = @transform_3, window_bounds = array<i64: 1, 32>}, {transform_indices = @transform_4, window_bounds = array<i64: 16, 32>}]} {
    %c0 = arith.constant 0 : index
    %c0_0 = arith.constant 0 : index
    %0 = vector.load %arg2[%c0, %c0_0] : memref<16x32xf32, #tpu.memory_space<vmem>>, vector<16x32xf32>
    %1 = arith.mulf %0, %0 : vector<16x32xf32>
    %cst = arith.constant dense<0.000000e+00> : vector<16xf32>
    %2 = vector.multi_reduction <add>, %1, %cst [1] : vector<16x32xf32> to vector<16xf32>
    %3 = vector.shape_cast %2 : vector<16xf32> to vector<16x1xf32>
    %cst_1 = arith.constant 3.125000e-02 : f32
    %4 = vector.broadcast %cst_1 : f32 to vector<16x1xf32>
    %5 = arith.mulf %3, %4 : vector<16x1xf32>
    %cst_2 = arith.constant 1.1920929E-7 : f32
    %6 = vector.broadcast %cst_2 : f32 to vector<16x1xf32>
    %7 = arith.addf %5, %6 : vector<16x1xf32>
    %8 = math.rsqrt %7 : vector<16x1xf32>
    %9 = vector.broadcast %8 : vector<16x1xf32> to vector<16x32xf32>
    %10 = arith.mulf %0, %9 : vector<16x32xf32>
    %c0_3 = arith.constant 0 : index
    %c0_4 = arith.constant 0 : index
    %11 = vector.load %arg4[%c0_3, %c0_4] : memref<1x32xf32, #tpu.memory_space<vmem>>, vector<1x32xf32>
    %12 = vector.broadcast %11 : vector<1x32xf32> to vector<16x32xf32>
    %13 = arith.mulf %10, %12 : vector<16x32xf32>
    %c0_5 = arith.constant 0 : index
    %c0_6 = arith.constant 0 : index
    %14 = vector.load %arg3[%c0_5, %c0_6] : memref<16x32xf32, #tpu.memory_space<vmem>>, vector<16x32xf32>
    %cst_7 = arith.constant 1.000000e+00 : f32
    %15 = vector.broadcast %cst_7 : f32 to vector<16x32xf32>
    %16 = arith.subf %15, %14 : vector<16x32xf32>
    %17 = math.tanh %16 : vector<16x32xf32>
    %c0_8 = arith.constant 0 : index
    %c0_9 = arith.constant 0 : index
    %18 = vector.load %arg1[%c0_8, %c0_9] : memref<16x32xf32, #tpu.memory_space<vmem>>, vector<16x32xf32>
    %19 = arith.mulf %13, %17 : vector<16x32xf32>
    %20 = arith.addf %18, %19 : vector<16x32xf32>
    %c0_10 = arith.constant 0 : index
    %c0_11 = arith.constant 0 : index
    %21 = vector.load %arg5[%c0_10, %c0_11] : memref<16x32xf32, #tpu.memory_space<vmem>>, vector<16x32xf32>
    tpu.vector_store %arg5[%c0_10, %c0_11], %20 {strides = array<i32>} : memref<16x32xf32, #tpu.memory_space<vmem>>, vector<16x32xf32>,
    return
  }
  func.func @transform_0(%arg0: i32) -> (i32, i32) {
    %c0_i32 = arith.constant 0 : i32
    %c0_i32_0 = arith.constant 0 : i32
    return %arg0, %c0_i32 : i32, i32
  }
  func.func @transform_1(%arg0: i32) -> (i32, i32) {
    %c0_i32 = arith.constant 0 : i32
    %c0_i32_0 = arith.constant 0 : i32
    return %arg0, %c0_i32 : i32, i32
  }
  func.func @transform_2(%arg0: i32) -> (i32, i32) {
    %c0_i32 = arith.constant 0 : i32
    %c0_i32_0 = arith.constant 0 : i32
    return %arg0, %c0_i32 : i32, i32
  }
  func.func @transform_3(%arg0: i32) -> (i32, i32) {
    %c0_i32 = arith.constant 0 : i32
    %c0_i32_0 = arith.constant 0 : i32
    %c0_i32_1 = arith.constant 0 : i32
    return %c0_i32, %c0_i32_0 : i32, i32
  }
  func.func @transform_4(%arg0: i32) -> (i32, i32) {
    %c0_i32 = arith.constant 0 : i32
    %c0_i32_0 = arith.constant 0 : i32
    return %arg0, %c0_i32 : i32, i32
  }
}

</mosaic_0001>

<llo_original>
// kernel: tpu_custom_call.1
$region0: #{tpu_custom_call.1}
  #allocation0 [shape = 'u32[]', space=smem, size = 0x4, offset = 0x4, fixed_abs, tag = 'smem constant byte address 0x4 - core index']
  #allocation1 [shape = 'u32[144,128]{1,0:T(1,128)}', space=vmem, size = 0x12000, scoped, tag = 'internal scratch']
  %s0 = inlined_call_operand.hbm [shape: f32[16,32], index: 0, kind: input, shape index: {}]
  %s1 = inlined_call_operand.hbm [shape: f32[16,32], index: 1, kind: input, shape index: {}]
  %s2 = inlined_call_operand.hbm [shape: f32[16,32], index: 2, kind: input, shape index: {}]
  %s3 = inlined_call_operand.vmem [shape: f32[1,32], index: 3, kind: input, shape index: {}]
  %s4 = inlined_call_operand.hbm [shape: f32[16,32], index: 4, kind: output, shape index: {}]
  %s5 = sld [smem:[#allocation0]]
  $region38: #{tpu_custom_call.1} parent=0
    _
  %s7 = ssub.s32 1, %s5
  %s8 = scalar_select 0, %s7, %s5
  $region1: #{tpu_custom_call.1} parent=0
    #allocation2 [shape = 'u8[8192]{0}', space=vmem, size = 0x2000, scoped, tag = 'input window, operand 0, single buffered']
    #allocation3 [shape = 's32[1]{0}', space=sflag, size = 0x4, scoped, tag = 'scoped memory for tpu_custom_call.1']
    #allocation4 [shape = 's32[1]{0}', space=sflag, size = 0x4, scoped, tag = 'scoped memory for tpu_custom_call.1']
    #allocation5 [shape = 'u8[8192]{0}', space=vmem, size = 0x2000, scoped, tag = 'input window, operand 1, single buffered']
    #allocation6 [shape = 's32[1]{0}', space=sflag, size = 0x4, scoped, tag = 'scoped memory for tpu_custom_call.1']
    #allocation7 [shape = 'u8[8192]{0}', space=vmem, size = 0x2000, scoped, tag = 'input window, operand 2, single buffered']
    #allocation8 [shape = 'u8[8192]{0}', space=vmem, size = 0x2000, scoped, tag = 'output window, operand 0, single buffered']
    %9 = vsyncpa [#allocation3], 0
    %10 = vsyncpa [#allocation6], 0
    %11 = vsyncpa [#allocation4], 0
    // Predicated region
    $region2: #{tpu_custom_call.1} parent=1 // pred_check
      _
    $region3: #{tpu_custom_call.1} parent=1 // pred_check_branch
      %13 = sbr.rel (0) target = $region5
    $region4: #{tpu_custom_call.1} parent=1 // pred_region
      %s15 = ssub.s32 256, 256
      %16 = vsyncadd [#allocation3], %s15
      %s17 = sshll.u32 [#allocation2], 4
      %s18 = int_to_ptr.vmem [resolvable:$true] %s17
      %23 = dma.hbm_to_vmem [thread:$0]  %s0, 256, %s18, [#allocation3], 128, 128, 8
    $region5: #{tpu_custom_call.1} parent=1 // pred_fallthru
      _
    // Predicated region
    $region6: #{tpu_custom_call.1} parent=1 // pred_check
      _
    $region7: #{tpu_custom_call.1} parent=1 // pred_check_branch
      %25 = sbr.rel (0) target = $region9
    $region8: #{tpu_custom_call.1} parent=1 // pred_region
      %s27 = ssub.s32 256, 256
      %28 = vsyncadd [#allocation6], %s27
      %s29 = sshll.u32 [#allocation5], 4
      %s30 = int_to_ptr.vmem [resolvable:$true] %s29
      %35 = dma.hbm_to_vmem [thread:$0]  %s1, 256, %s30, [#allocation6], 128, 128, 8
    $region9: #{tpu_custom_call.1} parent=1 // pred_fallthru
      _
    // Predicated region
    $region10: #{tpu_custom_call.1} parent=1 // pred_check
      _
    $region11: #{tpu_custom_call.1} parent=1 // pred_check_branch
      %37 = sbr.rel (0) target = $region13
    $region12: #{tpu_custom_call.1} parent=1 // pred_region
      %s39 = ssub.s32 256, 256
      %40 = vsyncadd [#allocation6], %s39
      %s41 = sshll.u32 [#allocation7], 4
      %s42 = int_to_ptr.vmem [resolvable:$true] %s41
      %47 = dma.hbm_to_vmem [thread:$0]  %s2, 256, %s42, [#allocation6], 128, 128, 8
    $region13: #{tpu_custom_call.1} parent=1 // pred_fallthru
      _
    // Predicated region
    $region14: #{tpu_custom_call.1} parent=1 // pred_check
      _
    $region15: #{tpu_custom_call.1} parent=1 // pred_check_branch
      %49 = sbr.rel (0) target = $region17
    $region16: #{tpu_custom_call.1} parent=1 // pred_region
      _
    $region17: #{tpu_custom_call.1} parent=1 // pred_fallthru
      _
    // Predicated region
    $region18: #{tpu_custom_call.1} parent=1 // pred_check
      _
    $region19: #{tpu_custom_call.1} parent=1 // pred_check_branch
      %51 = sbr.rel (0) target = $region21
    $region20: #{tpu_custom_call.1} parent=1 // pred_region
      %52 = dma.done [#allocation3], 256
    $region21: #{tpu_custom_call.1} parent=1 // pred_fallthru
      _
    // Predicated region
    $region22: #{tpu_custom_call.1} parent=1 // pred_check
      _
    $region23: #{tpu_custom_call.1} parent=1 // pred_check_branch
      %54 = sbr.rel (0) target = $region25
    $region24: #{tpu_custom_call.1} parent=1 // pred_region
      %55 = dma.done [#allocation6], 256
    $region25: #{tpu_custom_call.1} parent=1 // pred_fallthru
      _
    // Predicated region
    $region26: #{tpu_custom_call.1} parent=1 // pred_check
      _
    $region27: #{tpu_custom_call.1} parent=1 // pred_check_branch
      %57 = sbr.rel (0) target = $region29
    $region28: #{tpu_custom_call.1} parent=1 // pred_region
      %58 = dma.done [#allocation6], 256
    $region29: #{tpu_custom_call.1} parent=1 // pred_fallthru
      _
    %v59 = vld [vmem:[#allocation5] sm:$0xff]
    %v60 = vld [vmem:[#allocation5 + $0x8] sm:$0xff]
    %v61 = vmul.f32 %v59, %v59
    %v62 = vmul.f32 %v60, %v60
    %vm63 = vcmask 261120
    %v64 = vsel %vm63, %v61, 0.0
    %65 = vadd.xlane.f32.xlu0 %v64
    %v66 = vpop.xlane.xlu0 %65
    %v67 = vsel %vm63, %v62, 0.0
    %68 = vadd.xlane.f32.xlu0 %v67
    %v69 = vpop.xlane.xlu0 %68
    %v70 = vmul.f32 %v66, 0.03125
    %v71 = vmul.f32 %v69, 0.03125
    %v72 = vadd.f32 %v70, 1.1920929e-07
    %v73 = vadd.f32 %v71, 1.1920929e-07
    %v74 = vrsqrt.pop %v72
    %v75 = vrsqrt.pop %v73
    %v76 = vmul.f32 %v59, %v74
    %v77 = vmul.f32 %v60, %v75
    %v78 = vld [vmem:[%s3] sm:$0x1]
    %v80 = vlaneseq
    %v81 = vshrl.u32 %v80, 7
    %v82 = vsub.s32 0, %v81
    %v83 = vrot.slane %v78, %v82
    %v85 = vmul.f32 %v76, %v83
    %v86 = vmul.f32 %v77, %v83
    %v87 = vld [vmem:[#allocation7] sm:$0xff]
    %v88 = vld [vmem:[#allocation7 + $0x8] sm:$0xff]
    %v89 = vsub.f32 1.0, %v87
    %v90 = vsub.f32 1.0, %v88
    %v91 = vtanh.pop %v89
    %v92 = vtanh.pop %v90
    %v93 = vld [vmem:[#allocation2] sm:$0xff]
    %v94 = vld [vmem:[#allocation2 + $0x8] sm:$0xff]
    %v95 = vmul.f32 %v85, %v91
    %v96 = vmul.f32 %v86, %v92
    %v97 = vadd.f32 %v93, %v95
    %v98 = vadd.f32 %v94, %v96
    %99 = vst.msk [vmem:[#allocation8] sm:$0xff] %vm63, %v97
    %100 = vst.msk [vmem:[#allocation8 + $0x8] sm:$0xff] %vm63, %v98
    // Predicated region
    $region30: #{tpu_custom_call.1} parent=1 // pred_check
      _
    $region31: #{tpu_custom_call.1} parent=1 // pred_check_branch
      %102 = sbr.rel (0) target = $region33
    $region32: #{tpu_custom_call.1} parent=1 // pred_region
      %s104 = ssub.s32 256, 256
      %105 = vsyncadd [#allocation4], %s104
      %s106 = sshll.u32 [#allocation8], 4
      %s107 = int_to_ptr.vmem [resolvable:$true] %s106
      %112 = dma.vmem_to_hbm [thread:$0]  %s107, 256, %s4, [#allocation4], 128, 128, 8
    $region33: #{tpu_custom_call.1} parent=1 // pred_fallthru
      _
    // Predicated region
    $region34: #{tpu_custom_call.1} parent=1 // pred_check
      _
    $region35: #{tpu_custom_call.1} parent=1 // pred_check_branch
      %114 = sbr.rel (0) target = $region37
    $region36: #{tpu_custom_call.1} parent=1 // pred_region
      %115 = dma.done [#allocation4], 256
    $region37: #{tpu_custom_call.1} parent=1 // pred_fallthru
      _
    %116 = vsyncpa [#allocation3], 1
    %117 = vsyncpa [#allocation6], 1
    %118 = vsyncpa [#allocation4], 1

</llo_original>
